<compile_context>
chip_gen: v7x
topology: tpu7x:2x2x1
jax: 0.10.0
libtpu: 0.0.40
codegen_flags: <defaults>
</compile_context>

<pallas_src>
import numpy as np
import jax
import jax.numpy as jnp
from jax.experimental import pallas as pl
from jax.experimental.pallas import tpu as pltpu


# ---------------------------------------------------------------------------
# Schedule (plain numpy glue; matches torch cosine_beta_schedule)
# ---------------------------------------------------------------------------
def cosine_beta_schedule(timesteps, s=0.008):
    steps = timesteps + 1
    x = np.linspace(0, timesteps, steps, dtype=np.float64)
    alphas_cumprod = np.cos(((x / timesteps) + s) / (1 + s) * np.pi * 0.5) ** 2
    alphas_cumprod = alphas_cumprod / alphas_cumprod[0]
    betas = 1.0 - (alphas_cumprod[1:] / alphas_cumprod[:-1])
    return np.clip(betas, 0.0, 0.9999)


def _choose_r_tile(r, target):
    """Largest sublane-aligned (multiple of 8) divisor of r that is <= target."""
    if r <= target:
        return r
    for cand in range(target, 7, -1):
        if cand % 8 == 0 and r % cand == 0:
            return cand
    return r  # fallback: single block along R (still correct)


# ---------------------------------------------------------------------------
# Pallas kernel factory
# ---------------------------------------------------------------------------
def _make_diffusion_kernel(channels, emit_intermediates, inv_tile_elems):
    C = channels

    def kernel(coef_a_ref, coef_s_ref, tnorm_ref, w_ref, bias_ref,   # scalar prefetch (SMEM)
               x_ref, noise_ref,                                      # VMEM inputs
               *out_refs):                                            # VMEM outputs
        if emit_intermediates:
            xnoisy_ref, xrecon_ref, l1_ref, mse_ref = out_refs
        else:
            l1_ref, mse_ref = out_refs

        b = pl.program_id(0)
        a = coef_a_ref[b]      # sqrt(alphas_cumprod[t_b])
        s = coef_s_ref[b]      # sqrt(1 - alphas_cumprod[t_b])
        tn = tnorm_ref[b]      # t_b / num_timesteps

        # normalize_img ([0,1] -> [-1,1]) + q_sample, channel by channel.
        # Each channel slab is a dense (R_TILE, 128) f32 tile.
        x_noisy_ch = []
        for c in range(C):
            xc = x_ref[0, c]        # (R_TILE, 128)
            nc = noise_ref[0, c]    # (R_TILE, 128)
            xn = a * (xc * 2.0 - 1.0) + s * nc
            x_noisy_ch.append(xn)
            if emit_intermediates:
                xnoisy_ref[0, c] = xn.astype(xnoisy_ref.dtype)

        # Synthetic denoise_fn: channel mixing with SMEM scalar weights + time bias.
        # TODO(synk): the real denoise_fn is an externally supplied 3D U-Net; it is
        # replaced here by a deterministic channel-mixing surrogate.
        l1_acc = None
        mse_acc = None
        for d in range(C):
            rec = x_noisy_ch[0] * w_ref[d, 0]
            for c in range(1, C):
                rec = rec + x_noisy_ch[c] * w_ref[d, c]
            rec = rec + bias_ref[d] * tn
            if emit_intermediates:
                xrecon_ref[0, d] = rec.astype(xrecon_ref.dtype)

            diff = noise_ref[0, d] - rec
            a1 = jnp.sum(jnp.sum(jnp.abs(diff), axis=1, keepdims=True),
                         axis=0, keepdims=True)          # (1, 1)
            a2 = jnp.sum(jnp.sum(diff * diff, axis=1, keepdims=True),
                         axis=0, keepdims=True)          # (1, 1)
            l1_acc = a1 if l1_acc is None else l1_acc + a1
            mse_acc = a2 if mse_acc is None else mse_acc + a2

        # Per-tile partial means (equal tile sizes -> mean of means == global mean).
        l1_ref[0, 0] = l1_acc * inv_tile_elems
        mse_ref[0, 0] = mse_acc * inv_tile_elems

    return kernel


# ---------------------------------------------------------------------------
# Wrapper ("forward")
# ---------------------------------------------------------------------------
class GaussianDiffusionPallas:
    def __init__(self, *, image_size, num_frames, channels=4, timesteps=1000):
        self.image_size = image_size
        self.num_frames = num_frames
        self.channels = channels
        self.num_timesteps = int(timesteps)

        betas = cosine_beta_schedule(timesteps)
        alphas = 1.0 - betas
        alphas_cumprod = np.cumprod(alphas, axis=0)
        self.sqrt_alphas_cumprod = jnp.asarray(np.sqrt(alphas_cumprod), jnp.float32)
        self.sqrt_one_minus_alphas_cumprod = jnp.asarray(
            np.sqrt(1.0 - alphas_cumprod), jnp.float32)

        # Deterministic synthetic denoise_fn parameters (live in SMEM in the kernel).
        C = channels
        w = (0.05 * np.arange(C * C, dtype=np.float32).reshape(C, C) / max(C * C, 1)
             + 0.5 * np.eye(C, dtype=np.float32))
        self.w = jnp.asarray(w, jnp.float32)                                   # (C, C)
        self.bias = jnp.asarray(np.linspace(-0.1, 0.1, C, dtype=np.float32))   # (C,)

    def forward(self, x, key, *, return_intermediates=False,
                intermediates_dtype=jnp.float32):
        B, C, F, H, W = x.shape
        assert C == self.channels and F == self.num_frames
        assert H == self.image_size and W == self.image_size
        S = F * H * W
        assert S % 128 == 0, "flattened spatial dim must be lane-aligned"
        R = S // 128

        # ~1 MiB f32 blocks per tensor (keeps 2-buffer pipeline well inside the
        # 16 MiB / 32 MiB default scoped VMEM on v5e / v6e / v7x).
        r_target = max(8, (1 << 20) // (C * 128 * 4))
        R_TILE = _choose_r_tile(R, r_target)
        assert R % R_TILE == 0
        NS = R // R_TILE

        k_t, k_n = jax.random.split(key)
        t = jax.random.randint(k_t, (B,), 0, self.num_timesteps)
        # TODO(synk): noise could be generated in-kernel (pltpu.prng_*) to save a
        # full-tensor HBM round-trip, but that changes the RNG stream vs jax.random.normal.
        noise = jax.random.normal(k_n, (B, C, R, 128), dtype=jnp.float32)

        coef_a = self.sqrt_alphas_cumprod[t]                        # (B,)
        coef_s = self.sqrt_one_minus_alphas_cumprod[t]              # (B,)
        t_norm = t.astype(jnp.float32) / float(self.num_timesteps)  # (B,)

        x_tiled = x.reshape(B, C, R, 128).astype(jnp.float32)

        big_spec = pl.BlockSpec((1, C, R_TILE, 128),
                                lambda b, si, *_: (b, 0, si, 0))
        loss_spec = pl.BlockSpec((1, 1, 1, 1),
                                 lambda b, si, *_: (b, si, 0, 0))

        in_specs = [big_spec, big_spec]                 # x, noise
        out_specs = []
        out_shape = []
        if return_intermediates:
            out_specs += [big_spec, big_spec]
            out_shape += [jax.ShapeDtypeStruct((B, C, R, 128), intermediates_dtype),
                          jax.ShapeDtypeStruct((B, C, R, 128), intermediates_dtype)]
        out_specs += [loss_spec, loss_spec]
        out_shape += [jax.ShapeDtypeStruct((B, NS, 1, 1), jnp.float32),
                      jax.ShapeDtypeStruct((B, NS, 1, 1), jnp.float32)]

        inv_tile_elems = 1.0 / float(C * R_TILE * 128)
        kernel = _make_diffusion_kernel(C, return_intermediates, inv_tile_elems)

        block_bytes = C * R_TILE * 128 * 4
        n_big = 4 if return_intermediates else 2
        vmem_limit = int(min(48 << 20, max(16 << 20, 6 * n_big * block_bytes)))

        grid_spec = pltpu.PrefetchScalarGridSpec(
            num_scalar_prefetch=5,
            grid=(B, NS),
            in_specs=in_specs,
            out_specs=out_specs,
        )

        outs = pl.pallas_call(
            kernel,
            out_shape=tuple(out_shape),
            grid_spec=grid_spec,
            compiler_params=pltpu.CompilerParams(
                dimension_semantics=("parallel", "parallel"),  # no cross-grid accumulator
                vmem_limit_bytes=vmem_limit),
        )(coef_a, coef_s, t_norm, self.w, self.bias, x_tiled, noise)

        if return_intermediates:
            x_noisy, x_recon, l1_parts, mse_parts = outs
        else:
            l1_parts, mse_parts = outs
            x_noisy = x_recon = None

        losses = {"L1 Loss": jnp.mean(l1_parts), "MSE Loss": jnp.mean(mse_parts)}
        # TODO(synk): 'Dice Score' / 'SSIM Index' / 'PSNR Loss' / 'NMI Loss' rely on
        # external helpers (SSIM3D, mean_dice_score, PSNR, NMI) not defined in the
        # reference module; omitted.
        aux = {
            "coef_a": coef_a, "coef_s": coef_s, "t_norm": t_norm,
            "x_flat": x_tiled.reshape(B, C, S),
            "noise_flat": noise.reshape(B, C, S),
        }
        if return_intermediates:
            aux["x_noisy"] = x_noisy.reshape(B, C, F, H, W)
            aux["x_recon"] = x_recon.reshape(B, C, F, H, W)
            aux["noise"] = noise.reshape(B, C, F, H, W)
        return losses, aux


if __name__ == "__main__":
    B, C, F, H, W = 2, 4, 8, 16, 16
    model = GaussianDiffusionPallas(image_size=H, num_frames=F, channels=C, timesteps=1000)

    key = jax.random.PRNGKey(0)
    k_x, k_fwd = jax.random.split(key)
    x = jax.random.uniform(k_x, (B, C, F, H, W), dtype=jnp.float32)  # raw video in [0, 1]

    # Default (perf) path: only losses leave HBM.
    losses_fast, _ = model.forward(x, k_fwd)
    jax.block_until_ready(losses_fast["L1 Loss"])
    jax.block_until_ready(losses_fast["MSE Loss"])

    # Debug path: also emit x_noisy / x_recon for the reference check.
    losses, aux = model.forward(x, k_fwd, return_intermediates=True)
    jax.block_until_ready(losses["L1 Loss"])
    jax.block_until_ready(aux["x_noisy"])
    jax.block_until_ready(aux["x_recon"])

    # ---- pure-JAX reference check ----
    x_flat, noise = aux["x_flat"], aux["noise_flat"]
    ca, cs, tn = aux["coef_a"], aux["coef_s"], aux["t_norm"]
    x_norm = x_flat * 2.0 - 1.0
    x_noisy_ref = ca[:, None, None] * x_norm + cs[:, None, None] * noise
    x_recon_ref = (jnp.einsum("dc,bcs->bds", model.w, x_noisy_ref)
                   + model.bias[None, :, None] * tn[:, None, None])
    l1_ref = jnp.mean(jnp.abs(noise - x_recon_ref))
    mse_ref = jnp.mean((noise - x_recon_ref) ** 2)

    np.testing.assert_allclose(np.asarray(aux["x_noisy"].reshape(B, C, -1)),
                               np.asarray(x_noisy_ref), rtol=1e-4, atol=1e-4)
    np.testing.assert_allclose(np.asarray(aux["x_recon"].reshape(B, C, -1)),
                               np.asarray(x_recon_ref), rtol=1e-4, atol=1e-4)
    np.testing.assert_allclose(float(losses["L1 Loss"]), float(l1_ref), rtol=1e-3, atol=1e-3)
    np.testing.assert_allclose(float(losses["MSE Loss"]), float(mse_ref), rtol=1e-3, atol=1e-3)
    # Perf path must match the debug path (same t / noise from the same key).
    np.testing.assert_allclose(float(losses_fast["L1 Loss"]), float(losses["L1 Loss"]),
                               rtol=1e-5, atol=1e-6)
    np.testing.assert_allclose(float(losses_fast["MSE Loss"]), float(losses["MSE Loss"]),
                               rtol=1e-5, atol=1e-6)

    print("KERNEL_OK")
</pallas_src>

<mosaic_0001>
module attributes {stable_mosaic.version = 11 : i64} {
  func.func @kernel(%arg0: i32, %arg1: i32, %arg2: memref<2xf32, #tpu.memory_space<smem>>, %arg3: memref<2xf32, #tpu.memory_space<smem>>, %arg4: memref<2xf32, #tpu.memory_space<smem>>, %arg5: memref<4x4xf32, #tpu.memory_space<smem>>, %arg6: memref<4xf32, #tpu.memory_space<smem>>, %arg7: memref<1x4x16x128xf32, #tpu.memory_space<vmem>>, %arg8: memref<1x4x16x128xf32, #tpu.memory_space<vmem>>, %arg9: memref<1x1x1x1xf32, #tpu.memory_space<vmem>>, %arg10: memref<1x1x1x1xf32, #tpu.memory_space<vmem>>) attributes {dimension_semantics = [#tpu.dimension_semantics<parallel>, #tpu.dimension_semantics<parallel>], iteration_bounds = array<i64: 2, 1>, scalar_prefetch = 5 : i64, scratch_operands = 0 : i64, tpu.core_type = #tpu.core_type<tc>, window_params = [{transform_indices = @transform_0, window_bounds = array<i64: 1, 4, 16, 128>}, {transform_indices = @transform_1, window_bounds = array<i64: 1, 4, 16, 128>}, {transform_indices = @transform_2, window_bounds = array<i64: 1, 1, 1, 1>}, {transform_indices = @transform_3, window_bounds = array<i64: 1, 1, 1, 1>}]} {
    %0 = arith.index_cast %arg0 : i32 to index
    %1 = memref.load %arg2[%0] : memref<2xf32, #tpu.memory_space<smem>>
    %2 = arith.index_cast %arg0 : i32 to index
    %3 = memref.load %arg3[%2] : memref<2xf32, #tpu.memory_space<smem>>
    %4 = arith.index_cast %arg0 : i32 to index
    %5 = memref.load %arg4[%4] : memref<2xf32, #tpu.memory_space<smem>>
    %c0 = arith.constant 0 : index
    %c0_0 = arith.constant 0 : index
    %c0_1 = arith.constant 0 : index
    %c0_2 = arith.constant 0 : index
    %6 = vector.load %arg7[%c0, %c0_0, %c0_1, %c0_2] : memref<1x4x16x128xf32, #tpu.memory_space<vmem>>, vector<1x1x16x128xf32>
    %7 = vector.shape_cast %6 : vector<1x1x16x128xf32> to vector<16x128xf32>
    %c0_3 = arith.constant 0 : index
    %c0_4 = arith.constant 0 : index
    %c0_5 = arith.constant 0 : index
    %c0_6 = arith.constant 0 : index
    %8 = vector.load %arg8[%c0_3, %c0_4, %c0_5, %c0_6] : memref<1x4x16x128xf32, #tpu.memory_space<vmem>>, vector<1x1x16x128xf32>
    %9 = vector.shape_cast %8 : vector<1x1x16x128xf32> to vector<16x128xf32>
    %cst = arith.constant 2.000000e+00 : f32
    %10 = vector.broadcast %cst : f32 to vector<16x128xf32>
    %11 = arith.mulf %7, %10 : vector<16x128xf32>
    %cst_7 = arith.constant 1.000000e+00 : f32
    %12 = vector.broadcast %cst_7 : f32 to vector<16x128xf32>
    %13 = arith.subf %11, %12 : vector<16x128xf32>
    %14 = vector.broadcast %1 : f32 to vector<16x128xf32>
    %15 = arith.mulf %14, %13 : vector<16x128xf32>
    %16 = vector.broadcast %3 : f32 to vector<16x128xf32>
    %17 = arith.mulf %16, %9 : vector<16x128xf32>
    %18 = arith.addf %15, %17 : vector<16x128xf32>
    %c0_8 = arith.constant 0 : index
    %c1 = arith.constant 1 : index
    %c0_9 = arith.constant 0 : index
    %c0_10 = arith.constant 0 : index
    %19 = vector.load %arg7[%c0_8, %c1, %c0_9, %c0_10] : memref<1x4x16x128xf32, #tpu.memory_space<vmem>>, vector<1x1x16x128xf32>
    %20 = vector.shape_cast %19 : vector<1x1x16x128xf32> to vector<16x128xf32>
    %c0_11 = arith.constant 0 : index
    %c1_12 = arith.constant 1 : index
    %c0_13 = arith.constant 0 : index
    %c0_14 = arith.constant 0 : index
    %21 = vector.load %arg8[%c0_11, %c1_12, %c0_13, %c0_14] : memref<1x4x16x128xf32, #tpu.memory_space<vmem>>, vector<1x1x16x128xf32>
    %22 = vector.shape_cast %21 : vector<1x1x16x128xf32> to vector<16x128xf32>
    %cst_15 = arith.constant 2.000000e+00 : f32
    %23 = vector.broadcast %cst_15 : f32 to vector<16x128xf32>
    %24 = arith.mulf %20, %23 : vector<16x128xf32>
    %cst_16 = arith.constant 1.000000e+00 : f32
    %25 = vector.broadcast %cst_16 : f32 to vector<16x128xf32>
    %26 = arith.subf %24, %25 : vector<16x128xf32>
    %27 = vector.broadcast %1 : f32 to vector<16x128xf32>
    %28 = arith.mulf %27, %26 : vector<16x128xf32>
    %29 = vector.broadcast %3 : f32 to vector<16x128xf32>
    %30 = arith.mulf %29, %22 : vector<16x128xf32>
    %31 = arith.addf %28, %30 : vector<16x128xf32>
    %c0_17 = arith.constant 0 : index
    %c2 = arith.constant 2 : index
    %c0_18 = arith.constant 0 : index
    %c0_19 = arith.constant 0 : index
    %32 = vector.load %arg7[%c0_17, %c2, %c0_18, %c0_19] : memref<1x4x16x128xf32, #tpu.memory_space<vmem>>, vector<1x1x16x128xf32>
    %33 = vector.shape_cast %32 : vector<1x1x16x128xf32> to vector<16x128xf32>
    %c0_20 = arith.constant 0 : index
    %c2_21 = arith.constant 2 : index
    %c0_22 = arith.constant 0 : index
    %c0_23 = arith.constant 0 : index
    %34 = vector.load %arg8[%c0_20, %c2_21, %c0_22, %c0_23] : memref<1x4x16x128xf32, #tpu.memory_space<vmem>>, vector<1x1x16x128xf32>
    %35 = vector.shape_cast %34 : vector<1x1x16x128xf32> to vector<16x128xf32>
    %cst_24 = arith.constant 2.000000e+00 : f32
    %36 = vector.broadcast %cst_24 : f32 to vector<16x128xf32>
    %37 = arith.mulf %33, %36 : vector<16x128xf32>
    %cst_25 = arith.constant 1.000000e+00 : f32
    %38 = vector.broadcast %cst_25 : f32 to vector<16x128xf32>
    %39 = arith.subf %37, %38 : vector<16x128xf32>
    %40 = vector.broadcast %1 : f32 to vector<16x128xf32>
    %41 = arith.mulf %40, %39 : vector<16x128xf32>
    %42 = vector.broadcast %3 : f32 to vector<16x128xf32>
    %43 = arith.mulf %42, %35 : vector<16x128xf32>
    %44 = arith.addf %41, %43 : vector<16x128xf32>
    %c0_26 = arith.constant 0 : index
    %c3 = arith.constant 3 : index
    %c0_27 = arith.constant 0 : index
    %c0_28 = arith.constant 0 : index
    %45 = vector.load %arg7[%c0_26, %c3, %c0_27, %c0_28] : memref<1x4x16x128xf32, #tpu.memory_space<vmem>>, vector<1x1x16x128xf32>
    %46 = vector.shape_cast %45 : vector<1x1x16x128xf32> to vector<16x128xf32>
    %c0_29 = arith.constant 0 : index
    %c3_30 = arith.constant 3 : index
    %c0_31 = arith.constant 0 : index
    %c0_32 = arith.constant 0 : index
    %47 = vector.load %arg8[%c0_29, %c3_30, %c0_31, %c0_32] : memref<1x4x16x128xf32, #tpu.memory_space<vmem>>, vector<1x1x16x128xf32>
    %48 = vector.shape_cast %47 : vector<1x1x16x128xf32> to vector<16x128xf32>
    %cst_33 = arith.constant 2.000000e+00 : f32
    %49 = vector.broadcast %cst_33 : f32 to vector<16x128xf32>
    %50 = arith.mulf %46, %49 : vector<16x128xf32>
    %cst_34 = arith.constant 1.000000e+00 : f32
    %51 = vector.broadcast %cst_34 : f32 to vector<16x128xf32>
    %52 = arith.subf %50, %51 : vector<16x128xf32>
    %53 = vector.broadcast %1 : f32 to vector<16x128xf32>
    %54 = arith.mulf %53, %52 : vector<16x128xf32>
    %55 = vector.broadcast %3 : f32 to vector<16x128xf32>
    %56 = arith.mulf %55, %48 : vector<16x128xf32>
    %57 = arith.addf %54, %56 : vector<16x128xf32>
    %c0_35 = arith.constant 0 : index
    %c0_36 = arith.constant 0 : index
    %58 = memref.load %arg5[%c0_35, %c0_36] : memref<4x4xf32, #tpu.memory_space<smem>>
    %59 = vector.broadcast %58 : f32 to vector<16x128xf32>
    %60 = arith.mulf %18, %59 : vector<16x128xf32>
    %c0_37 = arith.constant 0 : index
    %c1_38 = arith.constant 1 : index
    %61 = memref.load %arg5[%c0_37, %c1_38] : memref<4x4xf32, #tpu.memory_space<smem>>
    %62 = vector.broadcast %61 : f32 to vector<16x128xf32>
    %63 = arith.mulf %31, %62 : vector<16x128xf32>
    %64 = arith.addf %60, %63 : vector<16x128xf32>
    %c0_39 = arith.constant 0 : index
    %c2_40 = arith.constant 2 : index
    %65 = memref.load %arg5[%c0_39, %c2_40] : memref<4x4xf32, #tpu.memory_space<smem>>
    %66 = vector.broadcast %65 : f32 to vector<16x128xf32>
    %67 = arith.mulf %44, %66 : vector<16x128xf32>
    %68 = arith.addf %64, %67 : vector<16x128xf32>
    %c0_41 = arith.constant 0 : index
    %c3_42 = arith.constant 3 : index
    %69 = memref.load %arg5[%c0_41, %c3_42] : memref<4x4xf32, #tpu.memory_space<smem>>
    %70 = vector.broadcast %69 : f32 to vector<16x128xf32>
    %71 = arith.mulf %57, %70 : vector<16x128xf32>
    %72 = arith.addf %68, %71 : vector<16x128xf32>
    %c0_43 = arith.constant 0 : index
    %73 = memref.load %arg6[%c0_43] : memref<4xf32, #tpu.memory_space<smem>>
    %74 = arith.mulf %73, %5 : f32
    %75 = vector.broadcast %74 : f32 to vector<16x128xf32>
    %76 = arith.addf %72, %75 : vector<16x128xf32>
    %c0_44 = arith.constant 0 : index
    %c0_45 = arith.constant 0 : index
    %c0_46 = arith.constant 0 : index
    %c0_47 = arith.constant 0 : index
    %77 = vector.load %arg8[%c0_44, %c0_45, %c0_46, %c0_47] : memref<1x4x16x128xf32, #tpu.memory_space<vmem>>, vector<1x1x16x128xf32>
    %78 = vector.shape_cast %77 : vector<1x1x16x128xf32> to vector<16x128xf32>
    %79 = arith.subf %78, %76 : vector<16x128xf32>
    %80 = math.absf %79 : vector<16x128xf32>
    %cst_48 = arith.constant dense<0.000000e+00> : vector<16xf32>
    %81 = vector.multi_reduction <add>, %80, %cst_48 [1] : vector<16x128xf32> to vector<16xf32>
    %82 = vector.shape_cast %81 : vector<16xf32> to vector<16x1xf32>
    %cst_49 = arith.constant dense<0.000000e+00> : vector<1xf32>
    %83 = vector.multi_reduction <add>, %82, %cst_49 [0] : vector<16x1xf32> to vector<1xf32>
    %84 = vector.shape_cast %83 : vector<1xf32> to vector<1x1xf32>
    %85 = arith.mulf %79, %79 : vector<16x128xf32>
    %cst_50 = arith.constant dense<0.000000e+00> : vector<16xf32>
    %86 = vector.multi_reduction <add>, %85, %cst_50 [1] : vector<16x128xf32> to vector<16xf32>
    %87 = vector.shape_cast %86 : vector<16xf32> to vector<16x1xf32>
    %cst_51 = arith.constant dense<0.000000e+00> : vector<1xf32>
    %88 = vector.multi_reduction <add>, %87, %cst_51 [0] : vector<16x1xf32> to vector<1xf32>
    %89 = vector.shape_cast %88 : vector<1xf32> to vector<1x1xf32>
    %c1_52 = arith.constant 1 : index
    %c0_53 = arith.constant 0 : index
    %90 = memref.load %arg5[%c1_52, %c0_53] : memref<4x4xf32, #tpu.memory_space<smem>>
    %91 = vector.broadcast %90 : f32 to vector<16x128xf32>
    %92 = arith.mulf %18, %91 : vector<16x128xf32>
    %c1_54 = arith.constant 1 : index
    %c1_55 = arith.constant 1 : index
    %93 = memref.load %arg5[%c1_54, %c1_55] : memref<4x4xf32, #tpu.memory_space<smem>>
    %94 = vector.broadcast %93 : f32 to vector<16x128xf32>
    %95 = arith.mulf %31, %94 : vector<16x128xf32>
    %96 = arith.addf %92, %95 : vector<16x128xf32>
    %c1_56 = arith.constant 1 : index
    %c2_57 = arith.constant 2 : index
    %97 = memref.load %arg5[%c1_56, %c2_57] : memref<4x4xf32, #tpu.memory_space<smem>>
    %98 = vector.broadcast %97 : f32 to vector<16x128xf32>
    %99 = arith.mulf %44, %98 : vector<16x128xf32>
    %100 = arith.addf %96, %99 : vector<16x128xf32>
    %c1_58 = arith.constant 1 : index
    %c3_59 = arith.constant 3 : index
    %101 = memref.load %arg5[%c1_58, %c3_59] : memref<4x4xf32, #tpu.memory_space<smem>>
    %102 = vector.broadcast %101 : f32 to vector<16x128xf32>
    %103 = arith.mulf %57, %102 : vector<16x128xf32>
    %104 = arith.addf %100, %103 : vector<16x128xf32>
    %c1_60 = arith.constant 1 : index
    %105 = memref.load %arg6[%c1_60] : memref<4xf32, #tpu.memory_space<smem>>
    %106 = arith.mulf %105, %5 : f32
    %107 = vector.broadcast %106 : f32 to vector<16x128xf32>
    %108 = arith.addf %104, %107 : vector<16x128xf32>
    %c0_61 = arith.constant 0 : index
    %c1_62 = arith.constant 1 : index
    %c0_63 = arith.constant 0 : index
    %c0_64 = arith.constant 0 : index
    %109 = vector.load %arg8[%c0_61, %c1_62, %c0_63, %c0_64] : memref<1x4x16x128xf32, #tpu.memory_space<vmem>>, vector<1x1x16x128xf32>
    %110 = vector.shape_cast %109 : vector<1x1x16x128xf32> to vector<16x128xf32>
    %111 = arith.subf %110, %108 : vector<16x128xf32>
    %112 = math.absf %111 : vector<16x128xf32>
    %cst_65 = arith.constant dense<0.000000e+00> : vector<16xf32>
    %113 = vector.multi_reduction <add>, %112, %cst_65 [1] : vector<16x128xf32> to vector<16xf32>
    %114 = vector.shape_cast %113 : vector<16xf32> to vector<16x1xf32>
    %cst_66 = arith.constant dense<0.000000e+00> : vector<1xf32>
    %115 = vector.multi_reduction <add>, %114, %cst_66 [0] : vector<16x1xf32> to vector<1xf32>
    %116 = vector.shape_cast %115 : vector<1xf32> to vector<1x1xf32>
    %117 = arith.mulf %111, %111 : vector<16x128xf32>
    %cst_67 = arith.constant dense<0.000000e+00> : vector<16xf32>
    %118 = vector.multi_reduction <add>, %117, %cst_67 [1] : vector<16x128xf32> to vector<16xf32>
    %119 = vector.shape_cast %118 : vector<16xf32> to vector<16x1xf32>
    %cst_68 = arith.constant dense<0.000000e+00> : vector<1xf32>
    %120 = vector.multi_reduction <add>, %119, %cst_68 [0] : vector<16x1xf32> to vector<1xf32>
    %121 = vector.shape_cast %120 : vector<1xf32> to vector<1x1xf32>
    %122 = arith.addf %84, %116 : vector<1x1xf32>
    %123 = arith.addf %89, %121 : vector<1x1xf32>
    %c2_69 = arith.constant 2 : index
    %c0_70 = arith.constant 0 : index
    %124 = memref.load %arg5[%c2_69, %c0_70] : memref<4x4xf32, #tpu.memory_space<smem>>
    %125 = vector.broadcast %124 : f32 to vector<16x128xf32>
    %126 = arith.mulf %18, %125 : vector<16x128xf32>
    %c2_71 = arith.constant 2 : index
    %c1_72 = arith.constant 1 : index
    %127 = memref.load %arg5[%c2_71, %c1_72] : memref<4x4xf32, #tpu.memory_space<smem>>
    %128 = vector.broadcast %127 : f32 to vector<16x128xf32>
    %129 = arith.mulf %31, %128 : vector<16x128xf32>
    %130 = arith.addf %126, %129 : vector<16x128xf32>
    %c2_73 = arith.constant 2 : index
    %c2_74 = arith.constant 2 : index
    %131 = memref.load %arg5[%c2_73, %c2_74] : memref<4x4xf32, #tpu.memory_space<smem>>
    %132 = vector.broadcast %131 : f32 to vector<16x128xf32>
    %133 = arith.mulf %44, %132 : vector<16x128xf32>
    %134 = arith.addf %130, %133 : vector<16x128xf32>
    %c2_75 = arith.constant 2 : index
    %c3_76 = arith.constant 3 : index
    %135 = memref.load %arg5[%c2_75, %c3_76] : memref<4x4xf32, #tpu.memory_space<smem>>
    %136 = vector.broadcast %135 : f32 to vector<16x128xf32>
    %137 = arith.mulf %57, %136 : vector<16x128xf32>
    %138 = arith.addf %134, %137 : vector<16x128xf32>
    %c2_77 = arith.constant 2 : index
    %139 = memref.load %arg6[%c2_77] : memref<4xf32, #tpu.memory_space<smem>>
    %140 = arith.mulf %139, %5 : f32
    %141 = vector.broadcast %140 : f32 to vector<16x128xf32>
    %142 = arith.addf %138, %141 : vector<16x128xf32>
    %c0_78 = arith.constant 0 : index
    %c2_79 = arith.constant 2 : index
    %c0_80 = arith.constant 0 : index
    %c0_81 = arith.constant 0 : index
    %143 = vector.load %arg8[%c0_78, %c2_79, %c0_80, %c0_81] : memref<1x4x16x128xf32, #tpu.memory_space<vmem>>, vector<1x1x16x128xf32>
    %144 = vector.shape_cast %143 : vector<1x1x16x128xf32> to vector<16x128xf32>
    %145 = arith.subf %144, %142 : vector<16x128xf32>
    %146 = math.absf %145 : vector<16x128xf32>
    %cst_82 = arith.constant dense<0.000000e+00> : vector<16xf32>
    %147 = vector.multi_reduction <add>, %146, %cst_82 [1] : vector<16x128xf32> to vector<16xf32>
    %148 = vector.shape_cast %147 : vector<16xf32> to vector<16x1xf32>
    %cst_83 = arith.constant dense<0.000000e+00> : vector<1xf32>
    %149 = vector.multi_reduction <add>, %148, %cst_83 [0] : vector<16x1xf32> to vector<1xf32>
    %150 = vector.shape_cast %149 : vector<1xf32> to vector<1x1xf32>
    %151 = arith.mulf %145, %145 : vector<16x128xf32>
    %cst_84 = arith.constant dense<0.000000e+00> : vector<16xf32>
    %152 = vector.multi_reduction <add>, %151, %cst_84 [1] : vector<16x128xf32> to vector<16xf32>
    %153 = vector.shape_cast %152 : vector<16xf32> to vector<16x1xf32>
    %cst_85 = arith.constant dense<0.000000e+00> : vector<1xf32>
    %154 = vector.multi_reduction <add>, %153, %cst_85 [0] : vector<16x1xf32> to vector<1xf32>
    %155 = vector.shape_cast %154 : vector<1xf32> to vector<1x1xf32>
    %156 = arith.addf %122, %150 : vector<1x1xf32>
    %157 = arith.addf %123, %155 : vector<1x1xf32>
    %c3_86 = arith.constant 3 : index
    %c0_87 = arith.constant 0 : index
    %158 = memref.load %arg5[%c3_86, %c0_87] : memref<4x4xf32, #tpu.memory_space<smem>>
    %159 = vector.broadcast %158 : f32 to vector<16x128xf32>
    %160 = arith.mulf %18, %159 : vector<16x128xf32>
    %c3_88 = arith.constant 3 : index
    %c1_89 = arith.constant 1 : index
    %161 = memref.load %arg5[%c3_88, %c1_89] : memref<4x4xf32, #tpu.memory_space<smem>>
    %162 = vector.broadcast %161 : f32 to vector<16x128xf32>
    %163 = arith.mulf %31, %162 : vector<16x128xf32>
    %164 = arith.addf %160, %163 : vector<16x128xf32>
    %c3_90 = arith.constant 3 : index
    %c2_91 = arith.constant 2 : index
    %165 = memref.load %arg5[%c3_90, %c2_91] : memref<4x4xf32, #tpu.memory_space<smem>>
    %166 = vector.broadcast %165 : f32 to vector<16x128xf32>
    %167 = arith.mulf %44, %166 : vector<16x128xf32>
    %168 = arith.addf %164, %167 : vector<16x128xf32>
    %c3_92 = arith.constant 3 : index
    %c3_93 = arith.constant 3 : index
    %169 = memref.load %arg5[%c3_92, %c3_93] : memref<4x4xf32, #tpu.memory_space<smem>>
    %170 = vector.broadcast %169 : f32 to vector<16x128xf32>
    %171 = arith.mulf %57, %170 : vector<16x128xf32>
    %172 = arith.addf %168, %171 : vector<16x128xf32>
    %c3_94 = arith.constant 3 : index
    %173 = memref.load %arg6[%c3_94] : memref<4xf32, #tpu.memory_space<smem>>
    %174 = arith.mulf %173, %5 : f32
    %175 = vector.broadcast %174 : f32 to vector<16x128xf32>
    %176 = arith.addf %172, %175 : vector<16x128xf32>
    %c0_95 = arith.constant 0 : index
    %c3_96 = arith.constant 3 : index
    %c0_97 = arith.constant 0 : index
    %c0_98 = arith.constant 0 : index
    %177 = vector.load %arg8[%c0_95, %c3_96, %c0_97, %c0_98] : memref<1x4x16x128xf32, #tpu.memory_space<vmem>>, vector<1x1x16x128xf32>
    %178 = vector.shape_cast %177 : vector<1x1x16x128xf32> to vector<16x128xf32>
    %179 = arith.subf %178, %176 : vector<16x128xf32>
    %180 = math.absf %179 : vector<16x128xf32>
    %cst_99 = arith.constant dense<0.000000e+00> : vector<16xf32>
    %181 = vector.multi_reduction <add>, %180, %cst_99 [1] : vector<16x128xf32> to vector<16xf32>
    %182 = vector.shape_cast %181 : vector<16xf32> to vector<16x1xf32>
    %cst_100 = arith.constant dense<0.000000e+00> : vector<1xf32>
    %183 = vector.multi_reduction <add>, %182, %cst_100 [0] : vector<16x1xf32> to vector<1xf32>
    %184 = vector.shape_cast %183 : vector<1xf32> to vector<1x1xf32>
    %185 = arith.mulf %179, %179 : vector<16x128xf32>
    %cst_101 = arith.constant dense<0.000000e+00> : vector<16xf32>
    %186 = vector.multi_reduction <add>, %185, %cst_101 [1] : vector<16x128xf32> to vector<16xf32>
    %187 = vector.shape_cast %186 : vector<16xf32> to vector<16x1xf32>
    %cst_102 = arith.constant dense<0.000000e+00> : vector<1xf32>
    %188 = vector.multi_reduction <add>, %187, %cst_102 [0] : vector<16x1xf32> to vector<1xf32>
    %189 = vector.shape_cast %188 : vector<1xf32> to vector<1x1xf32>
    %190 = arith.addf %156, %184 : vector<1x1xf32>
    %191 = arith.addf %157, %189 : vector<1x1xf32>
    %cst_103 = arith.constant 1.22070313E-4 : f32
    %192 = vector.broadcast %cst_103 : f32 to vector<1x1xf32>
    %193 = arith.mulf %190, %192 : vector<1x1xf32>
    %c0_104 = arith.constant 0 : index
    %c0_105 = arith.constant 0 : index
    %c0_106 = arith.constant 0 : index
    %c0_107 = arith.constant 0 : index
    %194 = vector.load %arg9[%c0_104, %c0_105, %c0_106, %c0_107] : memref<1x1x1x1xf32, #tpu.memory_space<vmem>>, vector<1x1x1x1xf32>
    %195 = vector.shape_cast %194 : vector<1x1x1x1xf32> to vector<1x1xf32>
    %196 = vector.shape_cast %193 : vector<1x1xf32> to vector<1x1x1x1xf32>
    tpu.vector_store %arg9[%c0_104, %c0_105, %c0_106, %c0_107], %196 {strides = array<i32>} : memref<1x1x1x1xf32, #tpu.memory_space<vmem>>, vector<1x1x1x1xf32>,
    %cst_108 = arith.constant 1.22070313E-4 : f32
    %197 = vector.broadcast %cst_108 : f32 to vector<1x1xf32>
    %198 = arith.mulf %191, %197 : vector<1x1xf32>
    %c0_109 = arith.constant 0 : index
    %c0_110 = arith.constant 0 : index
    %c0_111 = arith.constant 0 : index
    %c0_112 = arith.constant 0 : index
    %199 = vector.load %arg10[%c0_109, %c0_110, %c0_111, %c0_112] : memref<1x1x1x1xf32, #tpu.memory_space<vmem>>, vector<1x1x1x1xf32>
    %200 = vector.shape_cast %199 : vector<1x1x1x1xf32> to vector<1x1xf32>
    %201 = vector.shape_cast %198 : vector<1x1xf32> to vector<1x1x1x1xf32>
    tpu.vector_store %arg10[%c0_109, %c0_110, %c0_111, %c0_112], %201 {strides = array<i32>} : memref<1x1x1x1xf32, #tpu.memory_space<vmem>>, vector<1x1x1x1xf32>,
    return
  }
  func.func @transform_0(%arg0: i32, %arg1: i32, %arg2: memref<2xf32, #tpu.memory_space<smem>>, %arg3: memref<2xf32, #tpu.memory_space<smem>>, %arg4: memref<2xf32, #tpu.memory_space<smem>>, %arg5: memref<4x4xf32, #tpu.memory_space<smem>>, %arg6: memref<4xf32, #tpu.memory_space<smem>>) -> (i32, i32, i32, i32) {
    %c0_i32 = arith.constant 0 : i32
    %c0_i32_0 = arith.constant 0 : i32
    %c0_i32_1 = arith.constant 0 : i32
    return %arg0, %c0_i32, %arg1, %c0_i32_0 : i32, i32, i32, i32
  }
  func.func @transform_1(%arg0: i32, %arg1: i32, %arg2: memref<2xf32, #tpu.memory_space<smem>>, %arg3: memref<2xf32, #tpu.memory_space<smem>>, %arg4: memref<2xf32, #tpu.memory_space<smem>>, %arg5: memref<4x4xf32, #tpu.memory_space<smem>>, %arg6: memref<4xf32, #tpu.memory_space<smem>>) -> (i32, i32, i32, i32) {
    %c0_i32 = arith.constant 0 : i32
    %c0_i32_0 = arith.constant 0 : i32
    %c0_i32_1 = arith.constant 0 : i32
    return %arg0, %c0_i32, %arg1, %c0_i32_0 : i32, i32, i32, i32
  }
  func.func @transform_2(%arg0: i32, %arg1: i32, %arg2: memref<2xf32, #tpu.memory_space<smem>>, %arg3: memref<2xf32, #tpu.memory_space<smem>>, %arg4: memref<2xf32, #tpu.memory_space<smem>>, %arg5: memref<4x4xf32, #tpu.memory_space<smem>>, %arg6: memref<4xf32, #tpu.memory_space<smem>>) -> (i32, i32, i32, i32) {
    %c0_i32 = arith.constant 0 : i32
    %c0_i32_0 = arith.constant 0 : i32
    %c0_i32_1 = arith.constant 0 : i32
    return %arg0, %arg1, %c0_i32, %c0_i32_0 : i32, i32, i32, i32
  }
  func.func @transform_3(%arg0: i32, %arg1: i32, %arg2: memref<2xf32, #tpu.memory_space<smem>>, %arg3: memref<2xf32, #tpu.memory_space<smem>>, %arg4: memref<2xf32, #tpu.memory_space<smem>>, %arg5: memref<4x4xf32, #tpu.memory_space<smem>>, %arg6: memref<4xf32, #tpu.memory_space<smem>>) -> (i32, i32, i32, i32) {
    %c0_i32 = arith.constant 0 : i32
    %c0_i32_0 = arith.constant 0 : i32
    %c0_i32_1 = arith.constant 0 : i32
    return %arg0, %arg1, %c0_i32, %c0_i32_0 : i32, i32, i32, i32
  }
}

</mosaic_0001>

<llo_original>
// kernel: tpu_custom_call.1
$region0: #{tpu_custom_call.1}
  #allocation0 [shape = 'u32[]', space=smem, size = 0x4, offset = 0x4, fixed_abs, tag = 'smem constant byte address 0x4 - core index']
  #allocation1 [shape = 'u32[144,128]{1,0:T(1,128)}', space=vmem, size = 0x12000, scoped, tag = 'internal scratch']
  #allocation2 [shape = 's32[1]{0}', space=sflag, size = 0x4, scoped, tag = 'scoped memory for tpu_custom_call.1']
  #allocation3 [shape = 'u8[512]{0}', space=smem, size = 0x200, scoped, tag = 'prefetched SMEM operand 0']
  #allocation4 [shape = 'u8[512]{0}', space=smem, size = 0x200, scoped, tag = 'prefetched SMEM operand 1']
  #allocation5 [shape = 'u8[512]{0}', space=smem, size = 0x200, scoped, tag = 'prefetched SMEM operand 2']
  #allocation6 [shape = 'u8[2048]{0}', space=smem, size = 0x800, scoped, tag = 'prefetched SMEM operand 3']
  #allocation7 [shape = 'u8[512]{0}', space=smem, size = 0x200, scoped, tag = 'prefetched SMEM operand 4']
  %s0 = inlined_call_operand.hbm [shape: f32[2], index: 0, kind: input, shape index: {}]
  %s1 = inlined_call_operand.vmem [shape: f32[2], index: 1, kind: input, shape index: {}]
  %s2 = inlined_call_operand.vmem [shape: f32[2], index: 2, kind: input, shape index: {}]
  %s3 = inlined_call_operand.vmem [shape: f32[4,4], index: 3, kind: input, shape index: {}]
  %s4 = inlined_call_operand.vmem [shape: f32[4], index: 4, kind: input, shape index: {}]
  %s5 = inlined_call_operand.hbm [shape: f32[2,4,16,128], index: 5, kind: input, shape index: {}]
  %s6 = inlined_call_operand.hbm [shape: f32[2,4,16,128], index: 6, kind: input, shape index: {}]
  %s7 = inlined_call_operand.vmem [shape: f32[2,1,1,1], index: 7, kind: output, shape index: {0}]
  %s8 = inlined_call_operand.vmem [shape: f32[2,1,1,1], index: 8, kind: output, shape index: {1}]
  %9 = xla_tuple %s7, %s8
  %s10 = sld [smem:[#allocation0]]
  $region57: #{tpu_custom_call.1} parent=0
    _
  %s12 = ssub.s32 1, %s10
  %s13 = scalar_select 0, %s12, %s10
  %15 = dma.hbm_to_smem %s0, 16, [#allocation3], [#allocation2]
  %s16 = sshll.u32 %s1, 4
  %s17 = int_to_ptr.vmem [resolvable:$true] %s16
  %19 = dma.vmem_to_smem %s17, 16, [#allocation4], [#allocation2]
  %s20 = sshll.u32 %s2, 4
  %s21 = int_to_ptr.vmem [resolvable:$true] %s20
  %23 = dma.vmem_to_smem %s21, 16, [#allocation5], [#allocation2]
  %s24 = sshll.u32 %s3, 4
  %s25 = int_to_ptr.vmem [resolvable:$true] %s24
  %27 = dma.vmem_to_smem %s25, 64, [#allocation6], [#allocation2]
  %s28 = sshll.u32 %s4, 4
  %s29 = int_to_ptr.vmem [resolvable:$true] %s28
  %31 = dma.vmem_to_smem %s29, 16, [#allocation7], [#allocation2]
  %32 = dma.done [#allocation2], 128
  %33 = sfence
  $region1: #{tpu_custom_call.1} parent=0
    #allocation8 [shape = 'u8[65536]{0}', space=vmem, size = 0x10000, scoped, tag = 'input window, operand 5']
    #allocation9 [shape = 's32[2]{0}', space=sflag, size = 0x8, scoped, tag = 'scoped memory for tpu_custom_call.1']
    #allocation10 [shape = 'u8[65536]{0}', space=vmem, size = 0x10000, scoped, tag = 'input window, operand 6']
    #allocation11 [shape = 's32[2]{0}', space=sflag, size = 0x8, scoped, tag = 'scoped memory for tpu_custom_call.1']
    %34 = vsyncpa [#allocation9], 0
    %s35 = scalar_lea.sflag [#allocation9], 1
    %36 = vsyncpa %s35, 0
    %37 = vsyncpa [#allocation11], 0
    %s38 = scalar_lea.sflag [#allocation11], 1
    %39 = vsyncpa %s38, 0
    loop: start=0, step=1, limit=4
    $region2: #{tpu_custom_call.1} parent=1 // loop_pre_header
      _
    $region3: #{tpu_custom_call.1} parent=1 // loop_header
      %s41 = sphi 0, %s45
      %p42 = scmp.ge.s32.totalorder %s41, 4
      %s48 = sphi 0, %s60
      %s49 = sphi 0, %s56
      %s50 = sphi 0, %s48
      %s51 = sphi 0, %s49
      %s52 = sphi 0, %s50
      %s53 = sphi 0, %s51
      %s65 = sphi 0, %s67
      %s68 = sphi 0, %s65
      %s69 = sphi 0, %s68
      %s85 = sphi 0, %s69
      %s93 = sphi 0, %s95
      %s96 = sphi 0, %s93
      %s97 = sphi 0, %s96
      %s113 = sphi 0, %s97
      %s121 = sphi 0, %s123
      %s124 = sphi 0, %s121
      %s125 = sphi 0, %s124
      %s141 = sphi 0, %s125
      %s149 = sphi 0, %s151
      %s152 = sphi 0, %s149
      %s153 = sphi 0, %s152
      %s169 = sphi 0, %s153
    $region4: #{tpu_custom_call.1} parent=1 // loop_header_branch
      %44 = sbr.rel (%p42) target = $region8
    $region5: #{tpu_custom_call.1} parent=1 // loop_body
      %s46 = ssub.s32 %s41, 1
      %s47 = ssub.s32 %s41, 2
      %s54 = sadd.s32 1, %s49
      %p55 = scmp.ge.s32.totalorder %s54, 1
      %s56 = scalar_select %p55, 0, %s54
      %s57 = sadd.s32 1, %s48
      %s58 = scalar_select %p55, %s57, %s48
      %p59 = scmp.ge.s32.totalorder %s58, 2
      %s60 = scalar_select %p59, 0, %s58
      %s61 = ssub.s32 %s48, %s60
      %s62 = ssub.s32 %s49, %s56
      %s63 = sor.u32 %s61, %s62
      %p64 = scmp.eq.s32.totalorder %s63, 0
      %s66 = sadd.s32 %s65, 1
      %s67 = scalar_select %p64, %s65, %s66
      %p70 = pneg %p64
      %p71 = scmp.eq.s32.totalorder %s41, 1
      %p72 = por %p70, %p71
      %p73 = scmp.ne.s32.totalorder %s65, %s68
      %p74 = scmp.eq.s32.totalorder %s41, 0
      %p75 = por %p73, %p74
      %p76 = scmp.ne.s32.totalorder %s65, %s68
      %p77 = scmp.eq.s32.totalorder %s46, 1
      %p78 = por %p76, %p77
      %p79 = scmp.ne.s32.totalorder %s68, %s69
      %p80 = scmp.eq.s32.totalorder %s46, 0
      %p81 = por %p79, %p80
      %p82 = scmp.ne.s32.totalorder %s68, %s69
      %p83 = scmp.eq.s32.totalorder %s47, 1
      %p84 = por %p82, %p83
      %p86 = scmp.ne.s32.totalorder %s69, %s85
      %p87 = scmp.eq.s32.totalorder %s47, 0
      %p88 = por %p86, %p87
      %s89 = ssub.s32 %s48, %s60
      %s90 = ssub.s32 %s49, %s56
      %s91 = sor.u32 %s89, %s90
      %p92 = scmp.eq.s32.totalorder %s91, 0
      %s94 = sadd.s32 %s93, 1
      %s95 = scalar_select %p92, %s93, %s94
      %p98 = pneg %p92
      %p99 = scmp.eq.s32.totalorder %s41, 1
      %p100 = por %p98, %p99
      %p101 = scmp.ne.s32.totalorder %s93, %s96
      %p102 = scmp.eq.s32.totalorder %s41, 0
      %p103 = por %p101, %p102
      %p104 = scmp.ne.s32.totalorder %s93, %s96
      %p105 = scmp.eq.s32.totalorder %s46, 1
      %p106 = por %p104, %p105
      %p107 = scmp.ne.s32.totalorder %s96, %s97
      %p108 = scmp.eq.s32.totalorder %s46, 0
      %p109 = por %p107, %p108
      %p110 = scmp.ne.s32.totalorder %s96, %s97
      %p111 = scmp.eq.s32.totalorder %s47, 1
      %p112 = por %p110, %p111
      %p114 = scmp.ne.s32.totalorder %s97, %s113
      %p115 = scmp.eq.s32.totalorder %s47, 0
      %p116 = por %p114, %p115
      %s117 = ssub.s32 %s48, %s60
      %s118 = ssub.s32 %s49, %s56
      %s119 = sor.u32 %s117, %s118
      %p120 = scmp.eq.s32.totalorder %s119, 0
      %s122 = sadd.s32 %s121, 1
      %s123 = scalar_select %p120, %s121, %s122
      %p126 = pneg %p120
      %p127 = scmp.eq.s32.totalorder %s41, 1
      %p128 = por %p126, %p127
      %p129 = scmp.ne.s32.totalorder %s121, %s124
      %p130 = scmp.eq.s32.totalorder %s41, 0
      %p131 = por %p129, %p130
      %p132 = scmp.ne.s32.totalorder %s121, %s124
      %p133 = scmp.eq.s32.totalorder %s46, 1
      %p134 = por %p132, %p133
      %p135 = scmp.ne.s32.totalorder %s124, %s125
      %p136 = scmp.eq.s32.totalorder %s46, 0
      %p137 = por %p135, %p136
      %p138 = scmp.ne.s32.totalorder %s124, %s125
      %p139 = scmp.eq.s32.totalorder %s47, 1
      %p140 = por %p138, %p139
      %p142 = scmp.ne.s32.totalorder %s125, %s141
      %p143 = scmp.eq.s32.totalorder %s47, 0
      %p144 = por %p142, %p143
      %s145 = ssub.s32 %s48, %s60
      %s146 = ssub.s32 %s49, %s56
      %s147 = sor.u32 %s145, %s146
      %p148 = scmp.eq.s32.totalorder %s147, 0
      %s150 = sadd.s32 %s149, 1
      %s151 = scalar_select %p148, %s149, %s150
      %p154 = pneg %p148
      %p155 = scmp.eq.s32.totalorder %s41, 1
      %p156 = por %p154, %p155
      %p157 = scmp.ne.s32.totalorder %s149, %s152
      %p158 = scmp.eq.s32.totalorder %s41, 0
      %p159 = por %p157, %p158
      %p160 = scmp.ne.s32.totalorder %s149, %s152
      %p161 = scmp.eq.s32.totalorder %s46, 1
      %p162 = por %p160, %p161
      %p163 = scmp.ne.s32.totalorder %s152, %s153
      %p164 = scmp.eq.s32.totalorder %s46, 0
      %p165 = por %p163, %p164
      %p166 = scmp.ne.s32.totalorder %s152, %s153
      %p167 = scmp.eq.s32.totalorder %s47, 1
      %p168 = por %p166, %p167
      %p170 = scmp.ne.s32.totalorder %s153, %s169
      %p171 = scmp.eq.s32.totalorder %s47, 0
      %p172 = por %p170, %p171
      %p173 = scmp.le.s32.totalorder 1, %s41
      %p174 = scmp.lt.s32.totalorder %s41, 3
      %p175 = pnand %p173, %p174
      %p176 = pneg %p175
      // Predicated region
      $region9: #{tpu_custom_call.1} parent=5 // pred_check
        _
      $region10: #{tpu_custom_call.1} parent=5 // pred_check_branch
        %178 = sbr.rel (%p175) target = $region12
      $region11: #{tpu_custom_call.1} parent=5 // pred_region
        %s179 = ssub.s32 %s41, 1
      $region12: #{tpu_custom_call.1} parent=5 // pred_fallthru
        _
      %p180 = scmp.lt.s32.totalorder %s41, 2
      // Predicated region
      $region13: #{tpu_custom_call.1} parent=5 // pred_check
        %p181 = pneg %p180
      $region14: #{tpu_custom_call.1} parent=5 // pred_check_branch
        %183 = sbr.rel (%p181) target = $region16
      $region15: #{tpu_custom_call.1} parent=5 // pred_region
        // Predicated region
        $region17: #{tpu_custom_call.1} parent=15 // pred_check
          %p184 = pneg %p75
        $region18: #{tpu_custom_call.1} parent=15 // pred_check_branch
          %186 = sbr.rel (%p184) target = $region20
        $region19: #{tpu_custom_call.1} parent=15 // pred_region
          %s187 = sand.u32 %s65, 1
          %s188 = scalar_lea.sflag [#allocation9], %s187
          %s189 = sand.u32 %s65, 1
          %s190 = smul.addr %s189, 64
          %s191 = scalar_lea.vmem [#allocation8], %s190
          %s192 = smul.u32 2, %s49
          %s194 = ssub.s32 1024, 1024
          %195 = vsyncadd %s188, %s194
          %s196 = smul.addr %s48, 8
          %s197 = sadd.s32 %s192, %s196
          %s198 = smul.addr %s197, 128
          %s199 = scalar_lea.hbm %s5, %s198
          %s200 = sshll.u32 %s191, 4
          %s201 = int_to_ptr.vmem [resolvable:$true] %s200
          %206 = dma.hbm_to_vmem [thread:$0]  %s199, 1024, %s201, %s188, 128, 128, 8
        $region20: #{tpu_custom_call.1} parent=15 // pred_fallthru
          _
        // Predicated region
        $region21: #{tpu_custom_call.1} parent=15 // pred_check
          %p207 = pneg %p103
        $region22: #{tpu_custom_call.1} parent=15 // pred_check_branch
          %209 = sbr.rel (%p207) target = $region24
        $region23: #{tpu_custom_call.1} parent=15 // pred_region
          %s210 = sand.u32 %s93, 1
          %s211 = scalar_lea.sflag [#allocation11], %s210
          %s212 = sand.u32 %s93, 1
          %s213 = smul.addr %s212, 64
          %s214 = scalar_lea.vmem [#allocation10], %s213
          %s215 = smul.u32 2, %s49
          %s217 = ssub.s32 1024, 1024
          %218 = vsyncadd %s211, %s217
          %s219 = smul.addr %s48, 8
          %s220 = sadd.s32 %s215, %s219
          %s221 = smul.addr %s220, 128
          %s222 = scalar_lea.hbm %s6, %s221
          %s223 = sshll.u32 %s214, 4
          %s224 = int_to_ptr.vmem [resolvable:$true] %s223
          %229 = dma.hbm_to_vmem [thread:$0]  %s222, 1024, %s224, %s211, 128, 128, 8
        $region24: #{tpu_custom_call.1} parent=15 // pred_fallthru
          _
      $region16: #{tpu_custom_call.1} parent=5 // pred_fallthru
        _
      %p230 = scmp.le.s32.totalorder 1, %s41
      %p231 = scmp.lt.s32.totalorder %s41, 3
      %p232 = pnand %p230, %p231
      %p233 = pneg %p232
      // Predicated region
      $region25: #{tpu_custom_call.1} parent=5 // pred_check
        _
      $region26: #{tpu_custom_call.1} parent=5 // pred_check_branch
        %235 = sbr.rel (%p232) target = $region28
      $region27: #{tpu_custom_call.1} parent=5 // pred_region
        %s236 = ssub.s32 %s41, 1
        %s237 = sand.u32 %s68, 1
        %s238 = scalar_lea.sflag [#allocation9], %s237
        %s239 = sand.u32 %s68, 1
        %s240 = smul.addr %s239, 64
        %s241 = scalar_lea.vmem [#allocation8], %s240
        // Predicated region
        $region29: #{tpu_custom_call.1} parent=27 // pred_check
          %p242 = pneg %p81
        $region30: #{tpu_custom_call.1} parent=27 // pred_check_branch
          %244 = sbr.rel (%p242) target = $region32
        $region31: #{tpu_custom_call.1} parent=27 // pred_region
          %245 = dma.done %s238, 1024
        $region32: #{tpu_custom_call.1} parent=27 // pred_fallthru
          _
        %s246 = sand.u32 %s96, 1
        %s247 = scalar_lea.sflag [#allocation11], %s246
        %s248 = sand.u32 %s96, 1
        %s249 = smul.addr %s248, 64
        %s250 = scalar_lea.vmem [#allocation10], %s249
        // Predicated region
        $region33: #{tpu_custom_call.1} parent=27 // pred_check
          %p251 = pneg %p109
        $region34: #{tpu_custom_call.1} parent=27 // pred_check_branch
          %253 = sbr.rel (%p251) target = $region36
        $region35: #{tpu_custom_call.1} parent=27 // pred_region
          %254 = dma.done %s247, 1024
        $region36: #{tpu_custom_call.1} parent=27 // pred_fallthru
          _
        %s255 = sand.u32 %s68, 1
        %s256 = scalar_lea.sflag [#allocation9], %s255
        %s257 = sand.u32 %s68, 1
        %s258 = smul.addr %s257, 64
        %s259 = scalar_lea.vmem [#allocation8], %s258
        %p260 = pneg %p81
        %p261 = pneg %p78
        %s262 = sand.u32 %s96, 1
        %s263 = scalar_lea.sflag [#allocation11], %s262
        %s264 = sand.u32 %s96, 1
        %s265 = smul.addr %s264, 64
        %s266 = scalar_lea.vmem [#allocation10], %s265
        %p267 = pneg %p109
        %p268 = pneg %p106
        %p269 = pneg %p137
        %p270 = pneg %p134
        %p271 = scmp.lt.s32.totalorder %s50, 1
        %s272 = scalar_select %p271, %s50, 1
        %p273 = scmp.lt.s32.totalorder %s51, 0
        %s274 = scalar_select %p273, %s51, 0
        %s275 = sadd.s32 %s274, %s272
        %s276 = scalar_lea.vmem %s7, %s275
        %p277 = pneg %p165
        %p278 = pneg %p162
        %p279 = scmp.lt.s32.totalorder %s50, 1
        %s280 = scalar_select %p279, %s50, 1
        %p281 = scmp.lt.s32.totalorder %s51, 0
        %s282 = scalar_select %p281, %s51, 0
        %s283 = sadd.s32 %s282, %s280
        %s284 = scalar_lea.vmem %s8, %s283
        %s285 = smul.u32 2, %s51
        %s286 = smul.u32 2, %s51
        %p287 = scmp.lt.s32.totalorder %s50, 1
        %s288 = scalar_select %p287, %s50, 1
        %p289 = scmp.lt.s32.totalorder %s51, 0
        %s290 = scalar_select %p289, %s51, 0
        %s291 = sadd.s32 %s290, %s288
        %s292 = scalar_lea.vmem %s7, %s291
        %p293 = scmp.lt.s32.totalorder %s50, 1
        %s294 = scalar_select %p293, %s50, 1
        %p295 = scmp.lt.s32.totalorder %s51, 0
        %s296 = scalar_select %p295, %s51, 0
        %s297 = sadd.s32 %s296, %s294
        %s298 = scalar_lea.vmem %s8, %s297
        %s299 = sld [smem:[#allocation3 + %s50]]
        %s300 = sld [smem:[#allocation4 + %s50]]
        %s301 = sld [smem:[#allocation5 + %s50]]
        %v302 = vld [vmem:[%s241] sm:$0xff]
        %v303 = vld [vmem:[%s241 + $0x8] sm:$0xff]
        %v304 = vld [vmem:[%s250] sm:$0xff]
        %v305 = vld [vmem:[%s250 + $0x8] sm:$0xff]
        %v306 = vmul.f32 %v302, 2.0
        %v307 = vmul.f32 %v303, 2.0
        %v308 = vsub.f32 %v306, 1.0
        %v309 = vsub.f32 %v307, 1.0
        %v310 = vstv %s299
        %v311 = vmul.f32 %v310, %v308
        %v312 = vmul.f32 %v310, %v309
        %v313 = vstv %s300
        %v314 = vmul.f32 %v313, %v304
        %v315 = vmul.f32 %v313, %v305
        %v316 = vadd.f32 %v311, %v314
        %v317 = vadd.f32 %v312, %v315
        %s318 = scalar_lea.vmem %s241, 16 [#allocation8]
        %v319 = vld [vmem:[%s318] sm:$0xff]
        %v320 = vld [vmem:[%s318 + $0x8] sm:$0xff]
        %s321 = scalar_lea.vmem %s250, 16 [#allocation10]
        %v322 = vld [vmem:[%s321] sm:$0xff]
        %v323 = vld [vmem:[%s321 + $0x8] sm:$0xff]
        %v324 = vmul.f32 %v319, 2.0
        %v325 = vmul.f32 %v320, 2.0
        %v326 = vsub.f32 %v324, 1.0
        %v327 = vsub.f32 %v325, 1.0
        %v328 = vmul.f32 %v310, %v326
        %v329 = vmul.f32 %v310, %v327
        %v330 = vmul.f32 %v313, %v322
        %v331 = vmul.f32 %v313, %v323
        %v332 = vadd.f32 %v328, %v330
        %v333 = vadd.f32 %v329, %v331
        %s334 = scalar_lea.vmem %s241, 32 [#allocation8]
        %v335 = vld [vmem:[%s334] sm:$0xff]
        %v336 = vld [vmem:[%s334 + $0x8] sm:$0xff]
        %s337 = scalar_lea.vmem %s250, 32 [#allocation10]
        %v338 = vld [vmem:[%s337] sm:$0xff]
        %v339 = vld [vmem:[%s337 + $0x8] sm:$0xff]
        %v340 = vmul.f32 %v335, 2.0
        %v341 = vmul.f32 %v336, 2.0
        %v342 = vsub.f32 %v340, 1.0
        %v343 = vsub.f32 %v341, 1.0
        %v344 = vmul.f32 %v310, %v342
        %v345 = vmul.f32 %v310, %v343
        %v346 = vmul.f32 %v313, %v338
        %v347 = vmul.f32 %v313, %v339
        %v348 = vadd.f32 %v344, %v346
        %v349 = vadd.f32 %v345, %v347
        %s350 = scalar_lea.vmem %s241, 48 [#allocation8]
        %v351 = vld [vmem:[%s350] sm:$0xff]
        %v352 = vld [vmem:[%s350 + $0x8] sm:$0xff]
        %s353 = scalar_lea.vmem %s250, 48 [#allocation10]
        %v354 = vld [vmem:[%s353] sm:$0xff]
        %v355 = vld [vmem:[%s353 + $0x8] sm:$0xff]
        %v356 = vmul.f32 %v351, 2.0
        %v357 = vmul.f32 %v352, 2.0
        %v358 = vsub.f32 %v356, 1.0
        %v359 = vsub.f32 %v357, 1.0
        %v360 = vmul.f32 %v310, %v358
        %v361 = vmul.f32 %v310, %v359
        %v362 = vmul.f32 %v313, %v354
        %v363 = vmul.f32 %v313, %v355
        %v364 = vadd.f32 %v360, %v362
        %v365 = vadd.f32 %v361, %v363
        %s366 = sld [smem:[#allocation6]]
        %v367 = vstv %s366
        %v368 = vmul.f32 %v316, %v367
        %v369 = vmul.f32 %v317, %v367
        %s370 = sld [smem:[#allocation6 + $0x1]]
        %v371 = vstv %s370
        %v372 = vmul.f32 %v332, %v371
        %v373 = vmul.f32 %v333, %v371
        %v374 = vadd.f32 %v368, %v372
        %v375 = vadd.f32 %v369, %v373
        %s376 = sld [smem:[#allocation6 + $0x2]]
        %v377 = vstv %s376
        %v378 = vmul.f32 %v348, %v377
        %v379 = vmul.f32 %v349, %v377
        %v380 = vadd.f32 %v374, %v378
        %v381 = vadd.f32 %v375, %v379
        %s382 = sld [smem:[#allocation6 + $0x3]]
        %v383 = vstv %s382
        %v384 = vmul.f32 %v364, %v383
        %v385 = vmul.f32 %v365, %v383
        %v386 = vadd.f32 %v380, %v384
        %v387 = vadd.f32 %v381, %v385
        %s388 = sld [smem:[#allocation7]]
        %s389 = smul.f32 %s388, %s301
        %v390 = vstv %s389
        %v391 = vadd.f32 %v386, %v390
        %v392 = vadd.f32 %v387, %v390
        %v393 = vsub.f32 %v304, %v391
        %v394 = vsub.f32 %v305, %v392
        %v395 = vand.u32 2147483647, %v393
        %v396 = vand.u32 2147483647, %v394
        %397 = vadd.xlane.f32.xlu0 %v395
        %v398 = vpop.xlane.xlu0 %397
        %399 = vadd.xlane.f32.xlu0 %v396
        %v400 = vpop.xlane.xlu0 %399
        %v401 = vadd.f32 %v398, %v400
        %v402 = vrot.slane %v401, 4
        %v403 = vadd.f32 %v401, %v402
        %v404 = vrot.slane %v403, 2
        %v405 = vadd.f32 %v403, %v404
        %v406 = vrot.slane %v405, 1
        %v407 = vadd.f32 %v405, %v406
        %v408 = vmul.f32 %v393, %v393
        %v409 = vmul.f32 %v394, %v394
        %410 = vadd.xlane.f32.xlu0 %v408
        %v411 = vpop.xlane.xlu0 %410
        %412 = vadd.xlane.f32.xlu0 %v409
        %v413 = vpop.xlane.xlu0 %412
        %v414 = vadd.f32 %v411, %v413
        %v415 = vrot.slane %v414, 4
        %v416 = vadd.f32 %v414, %v415
        %v417 = vrot.slane %v416, 2
        %v418 = vadd.f32 %v416, %v417
        %v419 = vrot.slane %v418, 1
        %v420 = vadd.f32 %v418, %v419
        %s421 = sld [smem:[#allocation6 + $0x80]]
        %v422 = vstv %s421
        %v423 = vmul.f32 %v316, %v422
        %v424 = vmul.f32 %v317, %v422
        %s425 = sld [smem:[#allocation6 + $0x81]]
        %v426 = vstv %s425
        %v427 = vmul.f32 %v332, %v426
        %v428 = vmul.f32 %v333, %v426
        %v429 = vadd.f32 %v423, %v427
        %v430 = vadd.f32 %v424, %v428
        %s431 = sld [smem:[#allocation6 + $0x82]]
        %v432 = vstv %s431
        %v433 = vmul.f32 %v348, %v432
        %v434 = vmul.f32 %v349, %v432
        %v435 = vadd.f32 %v429, %v433
        %v436 = vadd.f32 %v430, %v434
        %s437 = sld [smem:[#allocation6 + $0x83]]
        %v438 = vstv %s437
        %v439 = vmul.f32 %v364, %v438
        %v440 = vmul.f32 %v365, %v438
        %v441 = vadd.f32 %v435, %v439
        %v442 = vadd.f32 %v436, %v440
        %s443 = sld [smem:[#allocation7 + $0x1]]
        %s444 = smul.f32 %s443, %s301
        %v445 = vstv %s444
        %v446 = vadd.f32 %v441, %v445
        %v447 = vadd.f32 %v442, %v445
        %v448 = vsub.f32 %v322, %v446
        %v449 = vsub.f32 %v323, %v447
        %v450 = vand.u32 2147483647, %v448
        %v451 = vand.u32 2147483647, %v449
        %452 = vadd.xlane.f32.xlu0 %v450
        %v453 = vpop.xlane.xlu0 %452
        %454 = vadd.xlane.f32.xlu0 %v451
        %v455 = vpop.xlane.xlu0 %454
        %v456 = vadd.f32 %v453, %v455
        %v457 = vrot.slane %v456, 4
        %v458 = vadd.f32 %v456, %v457
        %v459 = vrot.slane %v458, 2
        %v460 = vadd.f32 %v458, %v459
        %v461 = vrot.slane %v460, 1
        %v462 = vadd.f32 %v460, %v461
        %v463 = vmul.f32 %v448, %v448
        %v464 = vmul.f32 %v449, %v449
        %465 = vadd.xlane.f32.xlu0 %v463
        %v466 = vpop.xlane.xlu0 %465
        %467 = vadd.xlane.f32.xlu0 %v464
        %v468 = vpop.xlane.xlu0 %467
        %v469 = vadd.f32 %v466, %v468
        %v470 = vrot.slane %v469, 4
        %v471 = vadd.f32 %v469, %v470
        %v472 = vrot.slane %v471, 2
        %v473 = vadd.f32 %v471, %v472
        %v474 = vrot.slane %v473, 1
        %v475 = vadd.f32 %v473, %v474
        %v476 = vadd.f32 %v407, %v462
        %v477 = vadd.f32 %v420, %v475
        %s478 = sld [smem:[#allocation6 + $0x100]]
        %v479 = vstv %s478
        %v480 = vmul.f32 %v316, %v479
        %v481 = vmul.f32 %v317, %v479
        %s482 = sld [smem:[#allocation6 + $0x101]]
        %v483 = vstv %s482
        %v484 = vmul.f32 %v332, %v483
        %v485 = vmul.f32 %v333, %v483
        %v486 = vadd.f32 %v480, %v484
        %v487 = vadd.f32 %v481, %v485
        %s488 = sld [smem:[#allocation6 + $0x102]]
        %v489 = vstv %s488
        %v490 = vmul.f32 %v348, %v489
        %v491 = vmul.f32 %v349, %v489
        %v492 = vadd.f32 %v486, %v490
        %v493 = vadd.f32 %v487, %v491
        %s494 = sld [smem:[#allocation6 + $0x103]]
        %v495 = vstv %s494
        %v496 = vmul.f32 %v364, %v495
        %v497 = vmul.f32 %v365, %v495
        %v498 = vadd.f32 %v492, %v496
        %v499 = vadd.f32 %v493, %v497
        %s500 = sld [smem:[#allocation7 + $0x2]]
        %s501 = smul.f32 %s500, %s301
        %v502 = vstv %s501
        %v503 = vadd.f32 %v498, %v502
        %v504 = vadd.f32 %v499, %v502
        %v505 = vsub.f32 %v338, %v503
        %v506 = vsub.f32 %v339, %v504
        %v507 = vand.u32 2147483647, %v505
        %v508 = vand.u32 2147483647, %v506
        %509 = vadd.xlane.f32.xlu0 %v507
        %v510 = vpop.xlane.xlu0 %509
        %511 = vadd.xlane.f32.xlu0 %v508
        %v512 = vpop.xlane.xlu0 %511
        %v513 = vadd.f32 %v510, %v512
        %v514 = vrot.slane %v513, 4
        %v515 = vadd.f32 %v513, %v514
        %v516 = vrot.slane %v515, 2
        %v517 = vadd.f32 %v515, %v516
        %v518 = vrot.slane %v517, 1
        %v519 = vadd.f32 %v517, %v518
        %v520 = vmul.f32 %v505, %v505
        %v521 = vmul.f32 %v506, %v506
        %522 = vadd.xlane.f32.xlu0 %v520
        %v523 = vpop.xlane.xlu0 %522
        %524 = vadd.xlane.f32.xlu0 %v521
        %v525 = vpop.xlane.xlu0 %524
        %v526 = vadd.f32 %v523, %v525
        %v527 = vrot.slane %v526, 4
        %v528 = vadd.f32 %v526, %v527
        %v529 = vrot.slane %v528, 2
        %v530 = vadd.f32 %v528, %v529
        %v531 = vrot.slane %v530, 1
        %v532 = vadd.f32 %v530, %v531
        %v533 = vadd.f32 %v476, %v519
        %v534 = vadd.f32 %v477, %v532
        %s535 = sld [smem:[#allocation6 + $0x180]]
        %v536 = vstv %s535
        %v537 = vmul.f32 %v316, %v536
        %v538 = vmul.f32 %v317, %v536
        %s539 = sld [smem:[#allocation6 + $0x181]]
        %v540 = vstv %s539
        %v541 = vmul.f32 %v332, %v540
        %v542 = vmul.f32 %v333, %v540
        %v543 = vadd.f32 %v537, %v541
        %v544 = vadd.f32 %v538, %v542
        %s545 = sld [smem:[#allocation6 + $0x182]]
        %v546 = vstv %s545
        %v547 = vmul.f32 %v348, %v546
        %v548 = vmul.f32 %v349, %v546
        %v549 = vadd.f32 %v543, %v547
        %v550 = vadd.f32 %v544, %v548
        %s551 = sld [smem:[#allocation6 + $0x183]]
        %v552 = vstv %s551
        %v553 = vmul.f32 %v364, %v552
        %v554 = vmul.f32 %v365, %v552
        %v555 = vadd.f32 %v549, %v553
        %v556 = vadd.f32 %v550, %v554
        %s557 = sld [smem:[#allocation7 + $0x3]]
        %s558 = smul.f32 %s557, %s301
        %v559 = vstv %s558
        %v560 = vadd.f32 %v555, %v559
        %v561 = vadd.f32 %v556, %v559
        %v562 = vsub.f32 %v354, %v560
        %v563 = vsub.f32 %v355, %v561
        %v564 = vand.u32 2147483647, %v562
        %v565 = vand.u32 2147483647, %v563
        %566 = vadd.xlane.f32.xlu0 %v564
        %v567 = vpop.xlane.xlu0 %566
        %568 = vadd.xlane.f32.xlu0 %v565
        %v569 = vpop.xlane.xlu0 %568
        %v570 = vadd.f32 %v567, %v569
        %v571 = vrot.slane %v570, 4
        %v572 = vadd.f32 %v570, %v571
        %v573 = vrot.slane %v572, 2
        %v574 = vadd.f32 %v572, %v573
        %v575 = vrot.slane %v574, 1
        %v576 = vadd.f32 %v574, %v575
        %v577 = vmul.f32 %v562, %v562
        %v578 = vmul.f32 %v563, %v563
        %579 = vadd.xlane.f32.xlu0 %v577
        %v580 = vpop.xlane.xlu0 %579
        %581 = vadd.xlane.f32.xlu0 %v578
        %v582 = vpop.xlane.xlu0 %581
        %v583 = vadd.f32 %v580, %v582
        %v584 = vrot.slane %v583, 4
        %v585 = vadd.f32 %v583, %v584
        %v586 = vrot.slane %v585, 2
        %v587 = vadd.f32 %v585, %v586
        %v588 = vrot.slane %v587, 1
        %v589 = vadd.f32 %v587, %v588
        %v590 = vadd.f32 %v533, %v576
        %v591 = vadd.f32 %v534, %v589
        %v592 = vmul.f32 %v590, 0.00012207031
        %vm593 = vcmask 0
        %594 = vst.msk [vmem:[%s292] sm:$0x1] %vm593, %v592
        %v595 = vmul.f32 %v591, 0.00012207031
        %596 = vst.msk [vmem:[%s298] sm:$0x1] %vm593, %v595
        %p597 = scmp.lt.s32.totalorder %s50, 1
        %s598 = scalar_select %p597, %s50, 1
        %p599 = scmp.lt.s32.totalorder %s51, 0
        %s600 = scalar_select %p599, %s51, 0
        %s601 = sadd.s32 %s600, %s598
        %s602 = scalar_lea.vmem %s7, %s601
        %p603 = scmp.lt.s32.totalorder %s50, 1
        %s604 = scalar_select %p603, %s50, 1
        %p605 = scmp.lt.s32.totalorder %s51, 0
        %s606 = scalar_select %p605, %s51, 0
        %s607 = sadd.s32 %s606, %s604
        %s608 = scalar_lea.vmem %s8, %s607
        // Predicated region
        $region37: #{tpu_custom_call.1} parent=27 // pred_check
          %p609 = pneg %p134
        $region38: #{tpu_custom_call.1} parent=27 // pred_check_branch
          %611 = sbr.rel (%p609) target = $region40
        $region39: #{tpu_custom_call.1} parent=27 // pred_region
          _
        $region40: #{tpu_custom_call.1} parent=27 // pred_fallthru
          _
        // Predicated region
        $region41: #{tpu_custom_call.1} parent=27 // pred_check
          %p612 = pneg %p162
        $region42: #{tpu_custom_call.1} parent=27 // pred_check_branch
          %614 = sbr.rel (%p612) target = $region44
        $region43: #{tpu_custom_call.1} parent=27 // pred_region
          _
        $region44: #{tpu_custom_call.1} parent=27 // pred_fallthru
          _
      $region28: #{tpu_custom_call.1} parent=5 // pred_fallthru
        _
      %p615 = scmp.le.s32.totalorder 2, %s41
      // Predicated region
      $region45: #{tpu_custom_call.1} parent=5 // pred_check
        %p616 = pneg %p615
      $region46: #{tpu_custom_call.1} parent=5 // pred_check_branch
        %618 = sbr.rel (%p616) target = $region48
      $region47: #{tpu_custom_call.1} parent=5 // pred_region
        %s619 = ssub.s32 %s41, 2
        // Predicated region
        $region49: #{tpu_custom_call.1} parent=47 // pred_check
          %p620 = pneg %p140
        $region50: #{tpu_custom_call.1} parent=47 // pred_check_branch
          %622 = sbr.rel (%p620) target = $region52
        $region51: #{tpu_custom_call.1} parent=47 // pred_region
          %p623 = scmp.lt.s32.totalorder %s52, 1
          %s624 = scalar_select %p623, %s52, 1
          %p625 = scmp.lt.s32.totalorder %s53, 0
          %s626 = scalar_select %p625, %s53, 0
          %s627 = sadd.s32 %s626, %s624
          %s628 = scalar_lea.vmem %s7, %s627
        $region52: #{tpu_custom_call.1} parent=47 // pred_fallthru
          _
        // Predicated region
        $region53: #{tpu_custom_call.1} parent=47 // pred_check
          %p629 = pneg %p168
        $region54: #{tpu_custom_call.1} parent=47 // pred_check_branch
          %631 = sbr.rel (%p629) target = $region56
        $region55: #{tpu_custom_call.1} parent=47 // pred_region
          %p632 = scmp.lt.s32.totalorder %s52, 1
          %s633 = scalar_select %p632, %s52, 1
          %p634 = scmp.lt.s32.totalorder %s53, 0
          %s635 = scalar_select %p634, %s53, 0
          %s636 = sadd.s32 %s635, %s633
          %s637 = scalar_lea.vmem %s8, %s636
        $region56: #{tpu_custom_call.1} parent=47 // pred_fallthru
          _
      $region48: #{tpu_custom_call.1} parent=5 // pred_fallthru
        _
    $region6: #{tpu_custom_call.1} parent=1 // loop_footer
      %s45 = sadd.s32 1, %s41
    $region7: #{tpu_custom_call.1} parent=1 // loop_footer_branch
      %40 = sbr.rel target = $region3
    $region8: #{tpu_custom_call.1} parent=1 // loop_exit
      _
    %638 = vsyncpa [#allocation9], 1
    %s639 = scalar_lea.sflag [#allocation9], 1
    %640 = vsyncpa %s639, 1
    %641 = vsyncpa [#allocation11], 1
    %s642 = scalar_lea.sflag [#allocation11], 1
    %643 = vsyncpa %s642, 1

</llo_original>
